<compile_context>
chip_gen: v6e
topology: v6e:2x2x1
jax: 0.10.0
libtpu: 0.0.40
codegen_flags: <defaults>
</compile_context>

<pallas_src>
import math
import functools

import jax
import jax.numpy as jnp
from jax.experimental import pallas as pl
from jax.experimental.pallas import tpu as pltpu


# ----------------------------------------------------------------------------
# Pallas kernel: eta coefficients + MXU-fused child reduction + bias + tanh
# ----------------------------------------------------------------------------
def convnode_kernel(nodes_ref, mask_ref, cvec_ref, idx_ref, singles_ref,
                    expand_ref, wt_ref, wr_ref, wl_ref, conv_ref, out_ref):
    # ---- eta coefficients on the (tn, C) child-existence mask (f32, exact) --
    mask = mask_ref[...].astype(jnp.float32)                        # (tn, C)
    ns = jnp.sum(mask, axis=-1, keepdims=True)                      # (tn, 1)
    child_idx = idx_ref[...] * mask                                 # (tn, C)
    inv = 1.0 / jnp.maximum(ns - 1.0, 1.0)                          # guarded, exact
    c_r = jnp.where(ns == 1.0, singles_ref[...], child_idx * inv)   # (tn, C)
    c_l = (1.0 - c_r) * mask                                        # (tn, C)

    # ---- lane-repeat the coefficients on the MXU: (tn,C)@(C,C*F) ------------
    rep_r = jnp.dot(c_r, expand_ref[...], preferred_element_type=jnp.float32)
    rep_l = jnp.dot(c_l, expand_ref[...], preferred_element_type=jnp.float32)

    # ---- coefficient-scaled children, fully 128-lane dense -------------------
    cvec = cvec_ref[...].astype(jnp.float32)                        # (tn, C*F)
    scaled_r = (cvec * rep_r).astype(jnp.bfloat16)
    scaled_l = (cvec * rep_l).astype(jnp.bfloat16)

    # ---- per-child reduction + weight contraction fused into the MXU --------
    acc = jnp.dot(nodes_ref[...], wt_ref[...], preferred_element_type=jnp.float32)
    acc = acc + jnp.dot(scaled_r, wr_ref[...], preferred_element_type=jnp.float32)
    acc = acc + jnp.dot(scaled_l, wl_ref[...], preferred_element_type=jnp.float32)

    out_ref[...] = jnp.tanh(acc + conv_ref[...]).astype(out_ref.dtype)


# ----------------------------------------------------------------------------
# Wrapper (plain-JAX glue: flattening, dtype casts, weight permutation)
# ----------------------------------------------------------------------------
@functools.partial(jax.jit, static_argnames=("tile_n",))
def conv_node_forward(nodes, children, children_vectors,
                      w_t, w_l, w_r, conv, *, tile_n=2048):
    B, T, C = children.shape
    F = nodes.shape[-1]
    O = w_t.shape[-1]
    N = B * T

    # Row-tile selection: multiples of 32 (covers int8 sublane packing); when
    # the whole problem fits one tile, split into >= 2 grid steps so v7x's two
    # TensorCores both get work; tiny problems take a single full-array block
    # (always layout-legal regardless of alignment).
    tile_n = max(32, (tile_n // 32) * 32)
    if N > tile_n:
        tn = tile_n
    else:
        half = (((N + 1) // 2) + 31) // 32 * 32
        tn = half if (N >= 64 and half < N) else N
    grid = (pl.cdiv(N, tn),)

    # bf16 for the big HBM streams; int8 existence mask instead of f32 indices.
    nodes_f = nodes.reshape(N, F).astype(jnp.bfloat16)
    mask_i8 = (children.reshape(N, C) != 0).astype(jnp.int8)
    cvec_f = children_vectors.reshape(N, C * F).astype(jnp.bfloat16)   # lane-dense

    # Grid-invariant constants, kept resident in VMEM via constant index_maps.
    idx_row = jnp.arange(C, dtype=jnp.float32).reshape(1, C)            # 0..C-1
    singles_row = jnp.zeros((1, C), jnp.float32).at[0, 0].set(0.5)
    expand = (jnp.arange(C)[:, None] == (jnp.arange(C * F) // F)[None, :]
              ).astype(jnp.float32)                                      # (C, C*F) one-hot

    # Reproduce the PyTorch (N,F,3) -> (B,T,3,F) reshape + tensordot by
    # permuting the stacked weights, then split per slot; the child-slot
    # matrices are vertically stacked C times so the MXU contraction over
    # (C*F) also performs the per-child sum.
    weights = jnp.stack([w_t, w_r, w_l], axis=0)                 # (3, F, O)
    w_perm = weights.reshape(3 * F, O).reshape(F, 3, O)          # (F, 3, O)
    wt = w_perm[:, 0, :].astype(jnp.bfloat16)                    # (F, O)   (top slot)
    wr_stack = jnp.tile(w_perm[:, 1, :], (C, 1)).astype(jnp.bfloat16)  # (C*F, O)
    wl_stack = jnp.tile(w_perm[:, 2, :], (C, 1)).astype(jnp.bfloat16)  # (C*F, O)
    conv_b = conv.reshape(1, O).astype(jnp.float32)

    out = pl.pallas_call(
        convnode_kernel,
        out_shape=jax.ShapeDtypeStruct((N, O), jnp.bfloat16),
        grid_spec=pltpu.PrefetchScalarGridSpec(
            num_scalar_prefetch=0,
            grid=grid,
            in_specs=[
                pl.BlockSpec((tn, F), lambda i: (i, 0)),          # nodes (bf16)
                pl.BlockSpec((tn, C), lambda i: (i, 0)),          # child mask (int8)
                pl.BlockSpec((tn, C * F), lambda i: (i, 0)),      # cvec, lane-dense (bf16)
                pl.BlockSpec((1, C), lambda i: (0, 0)),           # idx constant (f32)
                pl.BlockSpec((1, C), lambda i: (0, 0)),           # singles constant (f32)
                pl.BlockSpec((C, C * F), lambda i: (0, 0)),       # one-hot expansion (f32)
                pl.BlockSpec((F, O), lambda i: (0, 0)),           # W_t (bf16)
                pl.BlockSpec((C * F, O), lambda i: (0, 0)),       # W_r stacked (bf16)
                pl.BlockSpec((C * F, O), lambda i: (0, 0)),       # W_l stacked (bf16)
                pl.BlockSpec((1, O), lambda i: (0, 0)),           # bias (f32)
            ],
            out_specs=pl.BlockSpec((tn, O), lambda i: (i, 0)),
        ),
        compiler_params=pltpu.CompilerParams(
            dimension_semantics=("parallel",)),                   # shards across TCs (v7x)
    )(nodes_f, mask_i8, cvec_f, idx_row, singles_row, expand,
      wt, wr_stack, wl_stack, conv_b)

    # Output is bf16 (caller-visible dtype change vs the f32 PyTorch module;
    # within the stated tolerance budget).
    return out.reshape(B, T, O)


# ----------------------------------------------------------------------------
# Pure-JAX reference mirroring the PyTorch module line by line (f32)
# ----------------------------------------------------------------------------
def conv_node_reference(nodes, children, children_vectors, w_t, w_l, w_r, conv):
    B, T, C = children.shape
    F = nodes.shape[-1]
    tree = jnp.concatenate([nodes[:, :, None, :], children_vectors], axis=2)

    # eta_t
    c_t = jnp.tile(jnp.concatenate(
        [jnp.ones((T, 1)), jnp.zeros((T, C))], axis=1)[None], (B, 1, 1))
    # eta_r
    ns = jnp.count_nonzero(children, axis=2).astype(jnp.float32).reshape(B, T, 1)
    ns = jnp.tile(ns, (1, 1, C + 1))
    mask = jnp.concatenate(
        [jnp.zeros((B, T, 1)), jnp.minimum(children, jnp.ones_like(children))], axis=2)
    p = jnp.tile(jnp.arange(-1.0, C, 1.0, dtype=jnp.float32)[None, None], (B, T, 1))
    child_indices = p * mask
    singles = jnp.concatenate(
        [jnp.zeros((B, T, 1)), jnp.full((B, T, 1), 0.5), jnp.zeros((B, T, C - 1))], axis=2)
    c_r = jnp.where(ns == 1.0, singles,
                    (1.0 - c_t) * (child_indices / (ns - 1.0)))
    # eta_l
    c_l = (1.0 - c_t) * (1.0 - c_r) * mask

    coef = jnp.stack([c_t, c_r, c_l], axis=3)                 # (B,T,C+1,3)
    weights = jnp.stack([w_t, w_r, w_l], axis=0)              # (3,F,O)
    x, y = B * T, C + 1
    result = tree.reshape(x, y, F)
    coef = coef.reshape(x, y, 3)
    result = jnp.transpose(result, (0, 2, 1))
    result = jnp.matmul(result, coef)                         # (x, F, 3)
    result = result.reshape(B, T, 3, F)                       # memory reinterpretation
    result = jnp.tensordot(result, weights, axes=[[2, 3], [0, 1]])
    return jnp.tanh(result + conv)


# ----------------------------------------------------------------------------
if __name__ == "__main__":
    B, T, C, F, O = 2, 8, 4, 32, 16   # batch, max_tree_size, max_children, feature, output

    key = jax.random.PRNGKey(0)
    k1, k2, k3, k4, k5, k6, k7 = jax.random.split(key, 7)

    # deterministic "parameters" (shapes from ConvNode.__init__)
    std = 1.0 / math.sqrt(F)
    w_t = jax.random.normal(k1, (F, O), jnp.float32) * std
    w_l = jax.random.normal(k2, (F, O), jnp.float32) * std
    w_r = jax.random.normal(k3, (F, O), jnp.float32) * std
    conv = jax.random.normal(k4, (O,), jnp.float32) * math.sqrt(2.0 / F)

    # deterministic inputs
    nodes = jax.random.normal(k5, (B, T, F), jnp.float32)
    children_vectors = jax.random.normal(k6, (B, T, C, F), jnp.float32)
    # child index table: 0 means "no child"; mix of 0 / non-zero entries
    children = jax.random.randint(k7, (B, T, C), 0, T).astype(jnp.float32)

    out = conv_node_forward(nodes, children, children_vectors, w_t, w_l, w_r, conv)
    out = jax.block_until_ready(out)

    ref = conv_node_reference(nodes, children, children_vectors, w_t, w_l, w_r, conv)
    ref = jax.block_until_ready(ref)

    assert out.shape == (B, T, O), out.shape
    out_f32 = out.astype(jnp.float32)
    # 2e-2 tolerance: kernel carries nodes / children_vectors / weights and the
    # output in bf16 (f32 accumulation); the reference is pure f32.
    assert bool(jnp.allclose(out_f32, ref, atol=2e-2, rtol=2e-2)), (
        "mismatch vs reference: max abs err "
        f"{float(jnp.max(jnp.abs(out_f32 - ref)))}")

    print("KERNEL_OK")
</pallas_src>

<mosaic_0001>
module attributes {stable_mosaic.version = 11 : i64} {
  func.func @convnode_kernel(%arg0: i32, %arg1: memref<16x32xbf16, #tpu.memory_space<vmem>>, %arg2: memref<16x4xi8, #tpu.memory_space<vmem>>, %arg3: memref<16x128xbf16, #tpu.memory_space<vmem>>, %arg4: memref<1x4xf32, #tpu.memory_space<vmem>>, %arg5: memref<1x4xf32, #tpu.memory_space<vmem>>, %arg6: memref<4x128xf32, #tpu.memory_space<vmem>>, %arg7: memref<32x16xbf16, #tpu.memory_space<vmem>>, %arg8: memref<128x16xbf16, #tpu.memory_space<vmem>>, %arg9: memref<128x16xbf16, #tpu.memory_space<vmem>>, %arg10: memref<1x16xf32, #tpu.memory_space<vmem>>, %arg11: memref<16x16xbf16, #tpu.memory_space<vmem>>) attributes {dimension_semantics = [#tpu.dimension_semantics<parallel>], iteration_bounds = array<i64: 1>, scalar_prefetch = 0 : i64, scratch_operands = 0 : i64, tpu.core_type = #tpu.core_type<tc>, window_params = [{transform_indices = @transform_0, window_bounds = array<i64: 16, 32>}, {transform_indices = @transform_1, window_bounds = array<i64: 16, 4>}, {transform_indices = @transform_2, window_bounds = array<i64: 16, 128>}, {pipeline_mode = #tpu.pipeline_mode<synchronous>, transform_indices = @transform_3, window_bounds = array<i64: 1, 4>}, {pipeline_mode = #tpu.pipeline_mode<synchronous>, transform_indices = @transform_4, window_bounds = array<i64: 1, 4>}, {pipeline_mode = #tpu.pipeline_mode<synchronous>, transform_indices = @transform_5, window_bounds = array<i64: 4, 128>}, {pipeline_mode = #tpu.pipeline_mode<synchronous>, transform_indices = @transform_6, window_bounds = array<i64: 32, 16>}, {pipeline_mode = #tpu.pipeline_mode<synchronous>, transform_indices = @transform_7, window_bounds = array<i64: 128, 16>}, {pipeline_mode = #tpu.pipeline_mode<synchronous>, transform_indices = @transform_8, window_bounds = array<i64: 128, 16>}, {pipeline_mode = #tpu.pipeline_mode<synchronous>, transform_indices = @transform_9, window_bounds = array<i64: 1, 16>}, {transform_indices = @transform_10, window_bounds = array<i64: 16, 16>}]} {
    %c0 = arith.constant 0 : index
    %c0_0 = arith.constant 0 : index
    %0 = vector.load %arg2[%c0, %c0_0] : memref<16x4xi8, #tpu.memory_space<vmem>>, vector<16x4xi8>
    %1 = arith.sitofp %0 : vector<16x4xi8> to vector<16x4xf32>
    %cst = arith.constant dense<0.000000e+00> : vector<16xf32>
    %2 = vector.multi_reduction <add>, %1, %cst [1] : vector<16x4xf32> to vector<16xf32>
    %3 = vector.shape_cast %2 : vector<16xf32> to vector<16x1xf32>
    %c0_1 = arith.constant 0 : index
    %c0_2 = arith.constant 0 : index
    %4 = vector.load %arg4[%c0_1, %c0_2] : memref<1x4xf32, #tpu.memory_space<vmem>>, vector<1x4xf32>
    %5 = vector.broadcast %4 : vector<1x4xf32> to vector<16x4xf32>
    %6 = arith.mulf %5, %1 : vector<16x4xf32>
    %cst_3 = arith.constant 1.000000e+00 : f32
    %7 = vector.broadcast %cst_3 : f32 to vector<16x1xf32>
    %8 = arith.subf %3, %7 : vector<16x1xf32>
    %cst_4 = arith.constant 1.000000e+00 : f32
    %9 = vector.broadcast %cst_4 : f32 to vector<16x1xf32>
    %10 = arith.maximumf %8, %9 : vector<16x1xf32>
    %cst_5 = arith.constant 1.000000e+00 : f32
    %11 = vector.broadcast %cst_5 : f32 to vector<16x1xf32>
    %12 = arith.divf %11, %10 : vector<16x1xf32>
    %cst_6 = arith.constant 1.000000e+00 : f32
    %13 = vector.broadcast %cst_6 : f32 to vector<16x1xf32>
    %14 = arith.cmpf oeq, %3, %13 : vector<16x1xf32>
    %c0_7 = arith.constant 0 : index
    %c0_8 = arith.constant 0 : index
    %15 = vector.load %arg5[%c0_7, %c0_8] : memref<1x4xf32, #tpu.memory_space<vmem>>, vector<1x4xf32>
    %16 = vector.broadcast %12 : vector<16x1xf32> to vector<16x4xf32>
    %17 = arith.mulf %6, %16 : vector<16x4xf32>
    %18 = vector.shape_cast %14 : vector<16x1xi1> to vector<16x1xi1>
    %19 = vector.broadcast %18 : vector<16x1xi1> to vector<16x4xi1>
    %20 = vector.shape_cast %15 : vector<1x4xf32> to vector<1x4xf32>
    %21 = vector.broadcast %20 : vector<1x4xf32> to vector<16x4xf32>
    %22 = arith.select %19, %21, %17 : vector<16x4xi1>, vector<16x4xf32>
    %cst_9 = arith.constant 1.000000e+00 : f32
    %23 = vector.broadcast %cst_9 : f32 to vector<16x4xf32>
    %24 = arith.subf %23, %22 : vector<16x4xf32>
    %25 = arith.mulf %24, %1 : vector<16x4xf32>
    %c0_10 = arith.constant 0 : index
    %c0_11 = arith.constant 0 : index
    %26 = vector.load %arg6[%c0_10, %c0_11] : memref<4x128xf32, #tpu.memory_space<vmem>>, vector<4x128xf32>
    %cst_12 = arith.constant dense<0.000000e+00> : vector<16x128xf32>
    %27 = tpu.matmul %22, %26, %cst_12 {dimension_numbers = #tpu.dot_dimension_numbers<[1], [0], [0], [1], [0, 0, 1, 1], [], []>} : vector<16x4xf32>, vector<4x128xf32>, vector<16x128xf32> -> vector<16x128xf32>
    %c0_13 = arith.constant 0 : index
    %c0_14 = arith.constant 0 : index
    %28 = vector.load %arg6[%c0_13, %c0_14] : memref<4x128xf32, #tpu.memory_space<vmem>>, vector<4x128xf32>
    %cst_15 = arith.constant dense<0.000000e+00> : vector<16x128xf32>
    %29 = tpu.matmul %25, %28, %cst_15 {dimension_numbers = #tpu.dot_dimension_numbers<[1], [0], [0], [1], [0, 0, 1, 1], [], []>} : vector<16x4xf32>, vector<4x128xf32>, vector<16x128xf32> -> vector<16x128xf32>
    %c0_16 = arith.constant 0 : index
    %c0_17 = arith.constant 0 : index
    %30 = vector.load %arg3[%c0_16, %c0_17] : memref<16x128xbf16, #tpu.memory_space<vmem>>, vector<16x128xbf16>
    %31 = arith.extf %30 : vector<16x128xbf16> to vector<16x128xf32>
    %32 = arith.mulf %31, %27 : vector<16x128xf32>
    %33 = arith.truncf %32 : vector<16x128xf32> to vector<16x128xbf16>
    %34 = arith.mulf %31, %29 : vector<16x128xf32>
    %35 = arith.truncf %34 : vector<16x128xf32> to vector<16x128xbf16>
    %c0_18 = arith.constant 0 : index
    %c0_19 = arith.constant 0 : index
    %36 = vector.load %arg1[%c0_18, %c0_19] : memref<16x32xbf16, #tpu.memory_space<vmem>>, vector<16x32xbf16>
    %c0_20 = arith.constant 0 : index
    %c0_21 = arith.constant 0 : index
    %37 = vector.load %arg7[%c0_20, %c0_21] : memref<32x16xbf16, #tpu.memory_space<vmem>>, vector<32x16xbf16>
    %cst_22 = arith.constant dense<0.000000e+00> : vector<16x16xf32>
    %38 = tpu.matmul %36, %37, %cst_22 {dimension_numbers = #tpu.dot_dimension_numbers<[1], [0], [0], [1], [0, 0, 1, 1], [], []>} : vector<16x32xbf16>, vector<32x16xbf16>, vector<16x16xf32> -> vector<16x16xf32>
    %c0_23 = arith.constant 0 : index
    %c0_24 = arith.constant 0 : index
    %39 = vector.load %arg8[%c0_23, %c0_24] : memref<128x16xbf16, #tpu.memory_space<vmem>>, vector<128x16xbf16>
    %cst_25 = arith.constant dense<0.000000e+00> : vector<16x16xf32>
    %40 = tpu.matmul %33, %39, %cst_25 {dimension_numbers = #tpu.dot_dimension_numbers<[1], [0], [0], [1], [0, 0, 1, 1], [], []>} : vector<16x128xbf16>, vector<128x16xbf16>, vector<16x16xf32> -> vector<16x16xf32>
    %41 = arith.addf %38, %40 : vector<16x16xf32>
    %c0_26 = arith.constant 0 : index
    %c0_27 = arith.constant 0 : index
    %42 = vector.load %arg9[%c0_26, %c0_27] : memref<128x16xbf16, #tpu.memory_space<vmem>>, vector<128x16xbf16>
    %cst_28 = arith.constant dense<0.000000e+00> : vector<16x16xf32>
    %43 = tpu.matmul %35, %42, %cst_28 {dimension_numbers = #tpu.dot_dimension_numbers<[1], [0], [0], [1], [0, 0, 1, 1], [], []>} : vector<16x128xbf16>, vector<128x16xbf16>, vector<16x16xf32> -> vector<16x16xf32>
    %44 = arith.addf %41, %43 : vector<16x16xf32>
    %c0_29 = arith.constant 0 : index
    %c0_30 = arith.constant 0 : index
    %45 = vector.load %arg10[%c0_29, %c0_30] : memref<1x16xf32, #tpu.memory_space<vmem>>, vector<1x16xf32>
    %46 = vector.broadcast %45 : vector<1x16xf32> to vector<16x16xf32>
    %47 = arith.addf %44, %46 : vector<16x16xf32>
    %48 = math.tanh %47 : vector<16x16xf32>
    %49 = arith.truncf %48 : vector<16x16xf32> to vector<16x16xbf16>
    %c0_31 = arith.constant 0 : index
    %c0_32 = arith.constant 0 : index
    %50 = vector.load %arg11[%c0_31, %c0_32] : memref<16x16xbf16, #tpu.memory_space<vmem>>, vector<16x16xbf16>
    tpu.vector_store %arg11[%c0_31, %c0_32], %49 {strides = array<i32>} : memref<16x16xbf16, #tpu.memory_space<vmem>>, vector<16x16xbf16>,
    return
  }
  func.func @transform_0(%arg0: i32) -> (i32, i32) {
    %c0_i32 = arith.constant 0 : i32
    %c0_i32_0 = arith.constant 0 : i32
    return %arg0, %c0_i32 : i32, i32
  }
  func.func @transform_1(%arg0: i32) -> (i32, i32) {
    %c0_i32 = arith.constant 0 : i32
    %c0_i32_0 = arith.constant 0 : i32
    return %arg0, %c0_i32 : i32, i32
  }
  func.func @transform_2(%arg0: i32) -> (i32, i32) {
    %c0_i32 = arith.constant 0 : i32
    %c0_i32_0 = arith.constant 0 : i32
    return %arg0, %c0_i32 : i32, i32
  }
  func.func @transform_3(%arg0: i32) -> (i32, i32) {
    %c0_i32 = arith.constant 0 : i32
    %c0_i32_0 = arith.constant 0 : i32
    %c0_i32_1 = arith.constant 0 : i32
    return %c0_i32, %c0_i32_0 : i32, i32
  }
  func.func @transform_4(%arg0: i32) -> (i32, i32) {
    %c0_i32 = arith.constant 0 : i32
    %c0_i32_0 = arith.constant 0 : i32
    %c0_i32_1 = arith.constant 0 : i32
    return %c0_i32, %c0_i32_0 : i32, i32
  }
  func.func @transform_5(%arg0: i32) -> (i32, i32) {
    %c0_i32 = arith.constant 0 : i32
    %c0_i32_0 = arith.constant 0 : i32
    %c0_i32_1 = arith.constant 0 : i32
    return %c0_i32, %c0_i32_0 : i32, i32
  }
  func.func @transform_6(%arg0: i32) -> (i32, i32) {
    %c0_i32 = arith.constant 0 : i32
    %c0_i32_0 = arith.constant 0 : i32
    %c0_i32_1 = arith.constant 0 : i32
    return %c0_i32, %c0_i32_0 : i32, i32
  }
  func.func @transform_7(%arg0: i32) -> (i32, i32) {
    %c0_i32 = arith.constant 0 : i32
    %c0_i32_0 = arith.constant 0 : i32
    %c0_i32_1 = arith.constant 0 : i32
    return %c0_i32, %c0_i32_0 : i32, i32
  }
  func.func @transform_8(%arg0: i32) -> (i32, i32) {
    %c0_i32 = arith.constant 0 : i32
    %c0_i32_0 = arith.constant 0 : i32
    %c0_i32_1 = arith.constant 0 : i32
    return %c0_i32, %c0_i32_0 : i32, i32
  }
  func.func @transform_9(%arg0: i32) -> (i32, i32) {
    %c0_i32 = arith.constant 0 : i32
    %c0_i32_0 = arith.constant 0 : i32
    %c0_i32_1 = arith.constant 0 : i32
    return %c0_i32, %c0_i32_0 : i32, i32
  }
  func.func @transform_10(%arg0: i32) -> (i32, i32) {
    %c0_i32 = arith.constant 0 : i32
    %c0_i32_0 = arith.constant 0 : i32
    return %arg0, %c0_i32 : i32, i32
  }
}

</mosaic_0001>

<llo_original>
// kernel: conv_node_forward.1
$region0: #{conv_node_forward.1}
  #allocation0 [shape = 'u32[]', space=smem, size = 0x4, offset = 0x4, fixed_abs, tag = 'smem constant byte address 0x4 - core index']
  #allocation1 [shape = 'u32[144,128]{1,0:T(1,128)}', space=vmem, size = 0x12000, scoped, tag = 'internal scratch']
  %s0 = inlined_call_operand.vmem [shape: bf16[16,32], index: 0, kind: input, shape index: {}]
  %s1 = inlined_call_operand.vmem [shape: s8[16,4], index: 1, kind: input, shape index: {}]
  %s2 = inlined_call_operand.vmem [shape: bf16[16,128], index: 2, kind: input, shape index: {}]
  %s3 = inlined_call_operand.vmem [shape: f32[1,4], index: 3, kind: input, shape index: {}]
  %s4 = inlined_call_operand.vmem [shape: f32[1,4], index: 4, kind: input, shape index: {}]
  %s5 = inlined_call_operand.vmem [shape: f32[4,128], index: 5, kind: input, shape index: {}]
  %s6 = inlined_call_operand.vmem [shape: bf16[32,16], index: 6, kind: input, shape index: {}]
  %s7 = inlined_call_operand.vmem [shape: bf16[128,16], index: 7, kind: input, shape index: {}]
  %s8 = inlined_call_operand.vmem [shape: bf16[128,16], index: 8, kind: input, shape index: {}]
  %s9 = inlined_call_operand.vmem [shape: f32[1,16], index: 9, kind: input, shape index: {}]
  %s10 = inlined_call_operand.hbm [shape: bf16[16,16], index: 10, kind: output, shape index: {}]
  %s11 = sld [smem:[#allocation0]]
  $region50: #{conv_node_forward.1} parent=0
    _
  %s13 = ssub.s32 1, %s11
  %s14 = scalar_select 0, %s13, %s11
  $region1: #{conv_node_forward.1} parent=0
    #allocation2 [shape = 'u8[4096]{0}', space=vmem, size = 0x1000, scoped, tag = 'output window, operand 0, single buffered']
    #allocation3 [shape = 's32[1]{0}', space=sflag, size = 0x4, scoped, tag = 'scoped memory for conv_node_forward.1']
    %15 = vsyncpa [#allocation3], 0
    // Predicated region
    $region2: #{conv_node_forward.1} parent=1 // pred_check
      _
    $region3: #{conv_node_forward.1} parent=1 // pred_check_branch
      %17 = sbr.rel (0) target = $region5
    $region4: #{conv_node_forward.1} parent=1 // pred_region
      _
    $region5: #{conv_node_forward.1} parent=1 // pred_fallthru
      _
    // Predicated region
    $region6: #{conv_node_forward.1} parent=1 // pred_check
      _
    $region7: #{conv_node_forward.1} parent=1 // pred_check_branch
      %19 = sbr.rel (0) target = $region9
    $region8: #{conv_node_forward.1} parent=1 // pred_region
      _
    $region9: #{conv_node_forward.1} parent=1 // pred_fallthru
      _
    // Predicated region
    $region10: #{conv_node_forward.1} parent=1 // pred_check
      _
    $region11: #{conv_node_forward.1} parent=1 // pred_check_branch
      %21 = sbr.rel (0) target = $region13
    $region12: #{conv_node_forward.1} parent=1 // pred_region
      _
    $region13: #{conv_node_forward.1} parent=1 // pred_fallthru
      _
    // Predicated region
    $region14: #{conv_node_forward.1} parent=1 // pred_check
      _
    $region15: #{conv_node_forward.1} parent=1 // pred_check_branch
      %23 = sbr.rel (0) target = $region17
    $region16: #{conv_node_forward.1} parent=1 // pred_region
      _
    $region17: #{conv_node_forward.1} parent=1 // pred_fallthru
      _
    // Predicated region
    $region18: #{conv_node_forward.1} parent=1 // pred_check
      _
    $region19: #{conv_node_forward.1} parent=1 // pred_check_branch
      %25 = sbr.rel (0) target = $region21
    $region20: #{conv_node_forward.1} parent=1 // pred_region
      _
    $region21: #{conv_node_forward.1} parent=1 // pred_fallthru
      _
    // Predicated region
    $region22: #{conv_node_forward.1} parent=1 // pred_check
      _
    $region23: #{conv_node_forward.1} parent=1 // pred_check_branch
      %27 = sbr.rel (0) target = $region25
    $region24: #{conv_node_forward.1} parent=1 // pred_region
      _
    $region25: #{conv_node_forward.1} parent=1 // pred_fallthru
      _
    // Predicated region
    $region26: #{conv_node_forward.1} parent=1 // pred_check
      _
    $region27: #{conv_node_forward.1} parent=1 // pred_check_branch
      %29 = sbr.rel (0) target = $region29
    $region28: #{conv_node_forward.1} parent=1 // pred_region
      _
    $region29: #{conv_node_forward.1} parent=1 // pred_fallthru
      _
    // Predicated region
    $region30: #{conv_node_forward.1} parent=1 // pred_check
      _
    $region31: #{conv_node_forward.1} parent=1 // pred_check_branch
      %31 = sbr.rel (0) target = $region33
    $region32: #{conv_node_forward.1} parent=1 // pred_region
      _
    $region33: #{conv_node_forward.1} parent=1 // pred_fallthru
      _
    // Predicated region
    $region34: #{conv_node_forward.1} parent=1 // pred_check
      _
    $region35: #{conv_node_forward.1} parent=1 // pred_check_branch
      %33 = sbr.rel (0) target = $region37
    $region36: #{conv_node_forward.1} parent=1 // pred_region
      _
    $region37: #{conv_node_forward.1} parent=1 // pred_fallthru
      _
    // Predicated region
    $region38: #{conv_node_forward.1} parent=1 // pred_check
      _
    $region39: #{conv_node_forward.1} parent=1 // pred_check_branch
      %35 = sbr.rel (0) target = $region41
    $region40: #{conv_node_forward.1} parent=1 // pred_region
      _
    $region41: #{conv_node_forward.1} parent=1 // pred_fallthru
      _
    %v37 = vld [vmem:[%s1] sm:$0x3]
    %v38 = vld [vmem:[%s1 + $0x2] sm:$0x3]
    %v39 = vunpack.c.0.s8 %v37
    %v40 = vunpack.c.0.s8 %v38
    %v41 = vcvt.s32.f32 %v39
    %v42 = vcvt.s32.f32 %v40
    %vm43 = vcmask 31744
    %v44 = vsel %vm43, %v41, 0.0
    %45 = vadd.xlane.f32.xlu0 %v44
    %v46 = vpop.xlane.xlu0 %45
    %v47 = vsel %vm43, %v42, 0.0
    %48 = vadd.xlane.f32.xlu0 %v47
    %v49 = vpop.xlane.xlu0 %48
    %v50 = vld [vmem:[%s3] sm:$0x1]
    %v52 = vlaneseq
    %v53 = vshrl.u32 %v52, 7
    %v54 = vsub.s32 0, %v53
    %v55 = vrot.slane %v50, %v54
    %v57 = vmul.f32 %v55, %v41
    %v58 = vmul.f32 %v55, %v42
    %v59 = vsub.f32 %v46, 1.0
    %v60 = vsub.f32 %v49, 1.0
    %v61 = vmax.f32 %v59, 1.0
    %v62 = vmax.f32 %v60, 1.0
    %v63 = vrcp.pop %v61
    %v64 = vmul.f32 1.0, %v63
    %v65 = vrcp.pop %v62
    %v66 = vmul.f32 1.0, %v65
    %vm67 = vcmp.eq.f32.partialorder %v46, 1.0
    %vm68 = vcmp.eq.f32.partialorder %v49, 1.0
    %v69 = vld [vmem:[%s4] sm:$0x1]
    %v70 = vmul.f32 %v57, %v64
    %v71 = vmul.f32 %v58, %v66
    %v72 = vsel %vm67, 1, 0
    %v73 = vsel %vm68, 1, 0
    %vm74 = vcmp.eq.s32.totalorder %v72, 1
    %vm75 = vcmp.eq.s32.totalorder %v73, 1
    %v77 = vlaneseq
    %v78 = vshrl.u32 %v77, 7
    %v79 = vsub.s32 0, %v78
    %v80 = vrot.slane %v69, %v79
    %v82 = vsel %vm74, %v80, %v70
    %v83 = vsel %vm75, %v80, %v71
    %v84 = vsub.f32 1.0, %v82
    %v85 = vsub.f32 1.0, %v83
    %v86 = vmul.f32 %v84, %v41
    %v87 = vmul.f32 %v85, %v42
    %v88 = vld [vmem:[%s5] sm:$0xf]
    %v90 = vsel %vm43, %v82, 0
    %v93 = vsel %vm43, %v83, 0
    %vm95 = vcmask 1043456
    %v97 = vsel %vm95, %v88, 0
    %99 = vmatprep.subr.mxu0 0.0
    %100 = vmatpush1.msra.mxu0 0.0
    %101 = vmatprep.subr.mxu0 0.0
    %102 = vmatpush1.msra.mxu0 0.0
    %103 = vmatprep.subr.mxu0 0.0
    %104 = vmatpush1.msra.mxu0 0.0
    %105 = vmatprep.subr.mxu0 0.0
    %106 = vmatpush1.msra.mxu0 0.0
    %107 = vmatprep.subr.mxu0 0.0
    %108 = vmatpush1.msra.mxu0 0.0
    %109 = vmatprep.subr.mxu0 0.0
    %110 = vmatpush1.msra.mxu0 0.0
    %111 = vmatprep.subr.mxu0 0.0
    %112 = vmatpush1.msra.mxu0 0.0
    %113 = vmatprep.subr.mxu0 0.0
    %114 = vmatpush1.msra.mxu0 0.0
    %115 = vmatprep.subr.mxu0 0.0
    %116 = vmatpush1.msra.mxu0 0.0
    %117 = vmatprep.subr.mxu0 0.0
    %118 = vmatpush1.msra.mxu0 0.0
    %119 = vmatprep.subr.mxu0 0.0
    %120 = vmatpush1.msra.mxu0 0.0
    %121 = vmatprep.subr.mxu0 0.0
    %122 = vmatpush1.msra.mxu0 0.0
    %123 = vmatprep.subr.mxu0 0.0
    %124 = vmatpush1.msra.mxu0 0.0
    %125 = vmatprep.subr.mxu0 0.0
    %126 = vmatpush1.msra.mxu0 0.0
    %127 = vmatprep.subr.mxu0 0.0
    %128 = vmatpush1.msra.mxu0 0.0
    %129 = vmatprep.subr.mxu0 0.0
    %130 = vmatpush1.msra.mxu0 %v97
    %131 = vmatprep.subr.mxu0 0.0
    %132 = vmatpush2.msra.mxu0 0.0
    %133 = vmatprep.subr.mxu0 0.0
    %134 = vmatpush2.msra.mxu0 0.0
    %135 = vmatprep.subr.mxu0 0.0
    %136 = vmatpush2.msra.mxu0 0.0
    %137 = vmatprep.subr.mxu0 0.0
    %138 = vmatpush2.msra.mxu0 0.0
    %139 = vmatprep.subr.mxu0 0.0
    %140 = vmatpush2.msra.mxu0 0.0
    %141 = vmatprep.subr.mxu0 0.0
    %142 = vmatpush2.msra.mxu0 0.0
    %143 = vmatprep.subr.mxu0 0.0
    %144 = vmatpush2.msra.mxu0 0.0
    %145 = vmatprep.subr.mxu0 0.0
    %146 = vmatpush2.msra.mxu0 0.0
    %147 = vmatprep.subr.mxu0 0.0
    %148 = vmatpush2.msra.mxu0 0.0
    %149 = vmatprep.subr.mxu0 0.0
    %150 = vmatpush2.msra.mxu0 0.0
    %151 = vmatprep.subr.mxu0 0.0
    %152 = vmatpush2.msra.mxu0 0.0
    %153 = vmatprep.subr.mxu0 0.0
    %154 = vmatpush2.msra.mxu0 0.0
    %155 = vmatprep.subr.mxu0 0.0
    %156 = vmatpush2.msra.mxu0 0.0
    %157 = vmatprep.subr.mxu0 0.0
    %158 = vmatpush2.msra.mxu0 0.0
    %159 = vmatprep.subr.mxu0 0.0
    %160 = vmatpush2.msra.mxu0 0.0
    %161 = vmatprep.subr.mxu0 0.0
    %162 = vmatpush2.msra.mxu0 0.0
    %163 = vmatprep.mubr.f32.mxu0 0.0
    %164 = vmatmul.mubr.f32.gmra.mxu0 %v90
    %v165 = vpop.f32.mrf.mxu0
    %v166 = vadd.f32 0.0, %v165
    %v167 = vpop.f32.mrf.mxu0
    %168 = vmatprep.mubr.f32.mxu0 0.0
    %169 = vmatmul.mubr.f32.gmra.mxu0 %v93
    %v170 = vpop.f32.mrf.mxu0
    %v171 = vadd.f32 0.0, %v170
    %v172 = vpop.f32.mrf.mxu0
    %173 = vdwg.mxu0
    %v175 = vsel %vm43, %v86, 0
    %v178 = vsel %vm43, %v87, 0
    %180 = vmatprep.subr.mxu0 0.0
    %181 = vmatpush1.msra.mxu0 0.0
    %182 = vmatprep.subr.mxu0 0.0
    %183 = vmatpush1.msra.mxu0 0.0
    %184 = vmatprep.subr.mxu0 0.0
    %185 = vmatpush1.msra.mxu0 0.0
    %186 = vmatprep.subr.mxu0 0.0
    %187 = vmatpush1.msra.mxu0 0.0
    %188 = vmatprep.subr.mxu0 0.0
    %189 = vmatpush1.msra.mxu0 0.0
    %190 = vmatprep.subr.mxu0 0.0
    %191 = vmatpush1.msra.mxu0 0.0
    %192 = vmatprep.subr.mxu0 0.0
    %193 = vmatpush1.msra.mxu0 0.0
    %194 = vmatprep.subr.mxu0 0.0
    %195 = vmatpush1.msra.mxu0 0.0
    %196 = vmatprep.subr.mxu0 0.0
    %197 = vmatpush1.msra.mxu0 0.0
    %198 = vmatprep.subr.mxu0 0.0
    %199 = vmatpush1.msra.mxu0 0.0
    %200 = vmatprep.subr.mxu0 0.0
    %201 = vmatpush1.msra.mxu0 0.0
    %202 = vmatprep.subr.mxu0 0.0
    %203 = vmatpush1.msra.mxu0 0.0
    %204 = vmatprep.subr.mxu0 0.0
    %205 = vmatpush1.msra.mxu0 0.0
    %206 = vmatprep.subr.mxu0 0.0
    %207 = vmatpush1.msra.mxu0 0.0
    %208 = vmatprep.subr.mxu0 0.0
    %209 = vmatpush1.msra.mxu0 0.0
    %210 = vmatprep.subr.mxu0 0.0
    %211 = vmatpush1.msra.mxu0 %v97
    %212 = vmatprep.subr.mxu0 0.0
    %213 = vmatpush2.msra.mxu0 0.0
    %214 = vmatprep.subr.mxu0 0.0
    %215 = vmatpush2.msra.mxu0 0.0
    %216 = vmatprep.subr.mxu0 0.0
    %217 = vmatpush2.msra.mxu0 0.0
    %218 = vmatprep.subr.mxu0 0.0
    %219 = vmatpush2.msra.mxu0 0.0
    %220 = vmatprep.subr.mxu0 0.0
    %221 = vmatpush2.msra.mxu0 0.0
    %222 = vmatprep.subr.mxu0 0.0
    %223 = vmatpush2.msra.mxu0 0.0
    %224 = vmatprep.subr.mxu0 0.0
    %225 = vmatpush2.msra.mxu0 0.0
    %226 = vmatprep.subr.mxu0 0.0
    %227 = vmatpush2.msra.mxu0 0.0
    %228 = vmatprep.subr.mxu0 0.0
    %229 = vmatpush2.msra.mxu0 0.0
    %230 = vmatprep.subr.mxu0 0.0
    %231 = vmatpush2.msra.mxu0 0.0
    %232 = vmatprep.subr.mxu0 0.0
    %233 = vmatpush2.msra.mxu0 0.0
    %234 = vmatprep.subr.mxu0 0.0
    %235 = vmatpush2.msra.mxu0 0.0
    %236 = vmatprep.subr.mxu0 0.0
    %237 = vmatpush2.msra.mxu0 0.0
    %238 = vmatprep.subr.mxu0 0.0
    %239 = vmatpush2.msra.mxu0 0.0
    %240 = vmatprep.subr.mxu0 0.0
    %241 = vmatpush2.msra.mxu0 0.0
    %242 = vmatprep.subr.mxu0 0.0
    %243 = vmatpush2.msra.mxu0 0.0
    %244 = vmatprep.mubr.f32.mxu0 0.0
    %245 = vmatmul.mubr.f32.gmra.mxu0 %v175
    %v246 = vpop.f32.mrf.mxu0
    %v247 = vadd.f32 0.0, %v246
    %v248 = vpop.f32.mrf.mxu0
    %249 = vmatprep.mubr.f32.mxu0 0.0
    %250 = vmatmul.mubr.f32.gmra.mxu0 %v178
    %v251 = vpop.f32.mrf.mxu0
    %v252 = vadd.f32 0.0, %v251
    %v253 = vpop.f32.mrf.mxu0
    %254 = vdwg.mxu0
    %v255 = vld [vmem:[%s2] sm:$0xf]
    %v256 = vld [vmem:[%s2 + $0x4] sm:$0xf]
    %v257 = vunpack.c.l.bf16 %v255
    %v258 = vunpack.c.l.bf16 %v256
    %v259 = vmul.f32 %v257, %v166
    %v260 = vmul.f32 %v258, %v171
    %v261 = vpack.c.bf16 %v260, %v259
    %v262 = vmul.f32 %v257, %v247
    %v263 = vmul.f32 %v258, %v252
    %v264 = vpack.c.bf16 %v263, %v262
    %v265 = vld [vmem:[%s0] sm:$0xf]
    %v266 = vld [vmem:[%s0 + $0x4] sm:$0xf]
    %v267 = vld [vmem:[%s6] sm:$0xf]
    %v268 = vld [vmem:[%s6 + $0x4] sm:$0xf]
    %v269 = vld [vmem:[%s6 + $0x8] sm:$0xf]
    %v270 = vld [vmem:[%s6 + $0xc] sm:$0xf]
    %v271 = vld [vmem:[%s7] sm:$0xf]
    %v272 = vld [vmem:[%s7 + $0x4] sm:$0xf]
    %v273 = vld [vmem:[%s7 + $0x8] sm:$0xf]
    %v274 = vld [vmem:[%s7 + $0xc] sm:$0xf]
    %v275 = vld [vmem:[%s7 + $0x10] sm:$0xf]
    %v276 = vld [vmem:[%s7 + $0x14] sm:$0xf]
    %v277 = vld [vmem:[%s7 + $0x18] sm:$0xf]
    %v278 = vld [vmem:[%s7 + $0x1c] sm:$0xf]
    %v279 = vld [vmem:[%s7 + $0x20] sm:$0xf]
    %v280 = vld [vmem:[%s7 + $0x24] sm:$0xf]
    %v281 = vld [vmem:[%s7 + $0x28] sm:$0xf]
    %v282 = vld [vmem:[%s7 + $0x2c] sm:$0xf]
    %v283 = vld [vmem:[%s7 + $0x30] sm:$0xf]
    %v284 = vld [vmem:[%s7 + $0x34] sm:$0xf]
    %v285 = vld [vmem:[%s7 + $0x38] sm:$0xf]
    %v286 = vld [vmem:[%s7 + $0x3c] sm:$0xf]
    %v303 = vunpack.c.l.b16 %v271
    %v304 = vunpack.c.l.b16 %v272
    %v305 = vunpack.c.l.b16 %v273
    %v306 = vunpack.c.l.b16 %v274
    %v307 = vunpack.c.l.b16 %v275
    %v308 = vunpack.c.l.b16 %v276
    %v309 = vunpack.c.l.b16 %v277
    %v310 = vunpack.c.l.b16 %v278
    %v311 = vunpack.c.l.b16 %v279
    %v312 = vunpack.c.l.b16 %v280
    %v313 = vunpack.c.l.b16 %v281
    %v314 = vunpack.c.l.b16 %v282
    %v315 = vunpack.c.l.b16 %v283
    %v316 = vunpack.c.l.b16 %v284
    %v317 = vunpack.c.l.b16 %v285
    %v318 = vunpack.c.l.b16 %v286
    %v319 = vpack.c.b16 %v304, %v303
    %v320 = vpack.c.b16 %v306, %v305
    %v321 = vpack.c.b16 %v308, %v307
    %v322 = vpack.c.b16 %v310, %v309
    %v323 = vpack.c.b16 %v312, %v311
    %v324 = vpack.c.b16 %v314, %v313
    %v325 = vpack.c.b16 %v316, %v315
    %v326 = vpack.c.b16 %v318, %v317
    %335 = vmatprep.subr.bf16.mxu0 0
    %336 = vmatpush1.bf16.msra.mxu0 %v326
    %337 = vmatprep.subr.bf16.mxu0 0
    %338 = vmatpush1.bf16.msra.mxu0 %v325
    %339 = vmatprep.subr.bf16.mxu0 0
    %340 = vmatpush1.bf16.msra.mxu0 %v324
    %341 = vmatprep.subr.bf16.mxu0 0
    %342 = vmatpush1.bf16.msra.mxu0 %v323
    %343 = vmatprep.subr.bf16.mxu0 0
    %344 = vmatpush1.bf16.msra.mxu0 %v322
    %345 = vmatprep.subr.bf16.mxu0 0
    %346 = vmatpush1.bf16.msra.mxu0 %v321
    %347 = vmatprep.subr.bf16.mxu0 0
    %348 = vmatpush1.bf16.msra.mxu0 %v320
    %349 = vmatprep.subr.bf16.mxu0 0
    %350 = vmatpush1.bf16.msra.mxu0 %v319
    %351 = vmatprep.subr.bf16.mxu0 0
    %352 = vmatpush2.bf16.msra.mxu0 0
    %353 = vmatprep.subr.bf16.mxu0 0
    %354 = vmatpush2.bf16.msra.mxu0 0
    %355 = vmatprep.subr.bf16.mxu0 0
    %356 = vmatpush2.bf16.msra.mxu0 0
    %357 = vmatprep.subr.bf16.mxu0 0
    %358 = vmatpush2.bf16.msra.mxu0 0
    %359 = vmatprep.subr.bf16.mxu0 0
    %360 = vmatpush2.bf16.msra.mxu0 0
    %361 = vmatprep.subr.bf16.mxu0 0
    %362 = vmatpush2.bf16.msra.mxu0 0
    %363 = vmatprep.subr.bf16.mxu0 0
    %364 = vmatpush2.bf16.msra.mxu0 0
    %365 = vmatprep.subr.bf16.mxu0 0
    %366 = vmatpush2.bf16.msra.mxu0 0
    %367 = vmatprep.mubr.bf16.mxu0 0
    %368 = vmatmul.mubr.bf16.gmra.mxu0 %v261
    %v369 = vpop.f32.mrf.mxu0
    %v370 = vadd.f32 0.0, %v369
    %v371 = vpop.f32.mrf.mxu0
    %v372 = vpop.f32.mrf.mxu0
    %v373 = vadd.f32 0.0, %v372
    %v374 = vpop.f32.mrf.mxu0
    %375 = vdwg.mxu0
    %v378 = vunpack.c.l.b16 %v265
    %v379 = vunpack.c.l.b16 %v266
    %v380 = vpack.c.b16 %v379, %v378
    %v385 = vunpack.c.l.b16 %v267
    %v386 = vunpack.c.l.b16 %v268
    %v387 = vunpack.c.l.b16 %v269
    %v388 = vunpack.c.l.b16 %v270
    %v389 = vpack.c.b16 %v386, %v385
    %v390 = vpack.c.b16 %v388, %v387
    %vm393 = vcmask 261120
    %v395 = vsel %vm393, %v380, 0
    %397 = vmatprep.subr.bf16.mxu0 0
    %398 = vmatpush1.bf16.msra.mxu0 0
    %399 = vmatprep.subr.bf16.mxu0 0
    %400 = vmatpush1.bf16.msra.mxu0 0
    %401 = vmatprep.subr.bf16.mxu0 0
    %402 = vmatpush1.bf16.msra.mxu0 0
    %403 = vmatprep.subr.bf16.mxu0 0
    %404 = vmatpush1.bf16.msra.mxu0 0
    %405 = vmatprep.subr.bf16.mxu0 0
    %406 = vmatpush1.bf16.msra.mxu0 0
    %407 = vmatprep.subr.bf16.mxu0 0
    %408 = vmatpush1.bf16.msra.mxu0 0
    %409 = vmatprep.subr.bf16.mxu0 0
    %410 = vmatpush1.bf16.msra.mxu0 %v390
    %411 = vmatprep.subr.bf16.mxu0 0
    %412 = vmatpush1.bf16.msra.mxu0 %v389
    %413 = vmatprep.subr.bf16.mxu0 0
    %414 = vmatpush2.bf16.msra.mxu0 0
    %415 = vmatprep.subr.bf16.mxu0 0
    %416 = vmatpush2.bf16.msra.mxu0 0
    %417 = vmatprep.subr.bf16.mxu0 0
    %418 = vmatpush2.bf16.msra.mxu0 0
    %419 = vmatprep.subr.bf16.mxu0 0
    %420 = vmatpush2.bf16.msra.mxu0 0
    %421 = vmatprep.subr.bf16.mxu0 0
    %422 = vmatpush2.bf16.msra.mxu0 0
    %423 = vmatprep.subr.bf16.mxu0 0
    %424 = vmatpush2.bf16.msra.mxu0 0
    %425 = vmatprep.subr.bf16.mxu0 0
    %426 = vmatpush2.bf16.msra.mxu0 0
    %427 = vmatprep.subr.bf16.mxu0 0
    %428 = vmatpush2.bf16.msra.mxu0 0
    %429 = vmatprep.mubr.bf16.mxu0 0
    %430 = vmatmul.mubr.bf16.gmra.mxu0 %v395
    %v431 = vpop.f32.mrf.mxu0
    %v432 = vadd.f32 %v370, %v431
    %v433 = vpop.f32.mrf.mxu0
    %v434 = vpop.f32.mrf.mxu0
    %v435 = vadd.f32 %v373, %v434
    %v436 = vpop.f32.mrf.mxu0
    %437 = vdwg.mxu0
    %v438 = vld [vmem:[%s8] sm:$0xf]
    %v439 = vld [vmem:[%s8 + $0x4] sm:$0xf]
    %v440 = vld [vmem:[%s8 + $0x8] sm:$0xf]
    %v441 = vld [vmem:[%s8 + $0xc] sm:$0xf]
    %v442 = vld [vmem:[%s8 + $0x10] sm:$0xf]
    %v443 = vld [vmem:[%s8 + $0x14] sm:$0xf]
    %v444 = vld [vmem:[%s8 + $0x18] sm:$0xf]
    %v445 = vld [vmem:[%s8 + $0x1c] sm:$0xf]
    %v446 = vld [vmem:[%s8 + $0x20] sm:$0xf]
    %v447 = vld [vmem:[%s8 + $0x24] sm:$0xf]
    %v448 = vld [vmem:[%s8 + $0x28] sm:$0xf]
    %v449 = vld [vmem:[%s8 + $0x2c] sm:$0xf]
    %v450 = vld [vmem:[%s8 + $0x30] sm:$0xf]
    %v451 = vld [vmem:[%s8 + $0x34] sm:$0xf]
    %v452 = vld [vmem:[%s8 + $0x38] sm:$0xf]
    %v453 = vld [vmem:[%s8 + $0x3c] sm:$0xf]
    %v470 = vunpack.c.l.b16 %v438
    %v471 = vunpack.c.l.b16 %v439
    %v472 = vunpack.c.l.b16 %v440
    %v473 = vunpack.c.l.b16 %v441
    %v474 = vunpack.c.l.b16 %v442
    %v475 = vunpack.c.l.b16 %v443
    %v476 = vunpack.c.l.b16 %v444
    %v477 = vunpack.c.l.b16 %v445
    %v478 = vunpack.c.l.b16 %v446
    %v479 = vunpack.c.l.b16 %v447
    %v480 = vunpack.c.l.b16 %v448
    %v481 = vunpack.c.l.b16 %v449
    %v482 = vunpack.c.l.b16 %v450
    %v483 = vunpack.c.l.b16 %v451
    %v484 = vunpack.c.l.b16 %v452
    %v485 = vunpack.c.l.b16 %v453
    %v486 = vpack.c.b16 %v471, %v470
    %v487 = vpack.c.b16 %v473, %v472
    %v488 = vpack.c.b16 %v475, %v474
    %v489 = vpack.c.b16 %v477, %v476
    %v490 = vpack.c.b16 %v479, %v478
    %v491 = vpack.c.b16 %v481, %v480
    %v492 = vpack.c.b16 %v483, %v482
    %v493 = vpack.c.b16 %v485, %v484
    %502 = vmatprep.subr.bf16.mxu0 0
    %503 = vmatpush1.bf16.msra.mxu0 %v493
    %504 = vmatprep.subr.bf16.mxu0 0
    %505 = vmatpush1.bf16.msra.mxu0 %v492
    %506 = vmatprep.subr.bf16.mxu0 0
    %507 = vmatpush1.bf16.msra.mxu0 %v491
    %508 = vmatprep.subr.bf16.mxu0 0
    %509 = vmatpush1.bf16.msra.mxu0 %v490
    %510 = vmatprep.subr.bf16.mxu0 0
    %511 = vmatpush1.bf16.msra.mxu0 %v489
    %512 = vmatprep.subr.bf16.mxu0 0
    %513 = vmatpush1.bf16.msra.mxu0 %v488
    %514 = vmatprep.subr.bf16.mxu0 0
    %515 = vmatpush1.bf16.msra.mxu0 %v487
    %516 = vmatprep.subr.bf16.mxu0 0
    %517 = vmatpush1.bf16.msra.mxu0 %v486
    %518 = vmatprep.subr.bf16.mxu0 0
    %519 = vmatpush2.bf16.msra.mxu0 0
    %520 = vmatprep.subr.bf16.mxu0 0
    %521 = vmatpush2.bf16.msra.mxu0 0
    %522 = vmatprep.subr.bf16.mxu0 0
    %523 = vmatpush2.bf16.msra.mxu0 0
    %524 = vmatprep.subr.bf16.mxu0 0
    %525 = vmatpush2.bf16.msra.mxu0 0
    %526 = vmatprep.subr.bf16.mxu0 0
    %527 = vmatpush2.bf16.msra.mxu0 0
    %528 = vmatprep.subr.bf16.mxu0 0
    %529 = vmatpush2.bf16.msra.mxu0 0
    %530 = vmatprep.subr.bf16.mxu0 0
    %531 = vmatpush2.bf16.msra.mxu0 0
    %532 = vmatprep.subr.bf16.mxu0 0
    %533 = vmatpush2.bf16.msra.mxu0 0
    %534 = vmatprep.mubr.bf16.mxu0 0
    %535 = vmatmul.mubr.bf16.gmra.mxu0 %v264
    %v536 = vpop.f32.mrf.mxu0
    %v537 = vadd.f32 0.0, %v536
    %v538 = vpop.f32.mrf.mxu0
    %v539 = vpop.f32.mrf.mxu0
    %v540 = vadd.f32 0.0, %v539
    %v541 = vpop.f32.mrf.mxu0
    %542 = vdwg.mxu0
    %v543 = vadd.f32 %v432, %v537
    %v544 = vadd.f32 %v435, %v540
    %v545 = vld [vmem:[%s9] sm:$0x1]
    %v547 = vlaneseq
    %v548 = vshrl.u32 %v547, 7
    %v549 = vsub.s32 0, %v548
    %v550 = vrot.slane %v545, %v549
    %v552 = vadd.f32 %v543, %v550
    %v553 = vadd.f32 %v544, %v550
    %v554 = vtanh.pop %v552
    %v555 = vtanh.pop %v553
    %v556 = vpack.c.bf16 %v555, %v554
    %v558 = vunpack.c.l.b16 %v556
    %v559 = vunpack.c.h.b16 %v556
    %v560 = vpack.c.b16 %v558, %v558
    %v561 = vpack.c.b16 %v559, %v559
    %vm564 = vcmask 125952
    %565 = vst.msk [vmem:[#allocation2] sm:$0xf] %vm564, %v560
    %566 = vst.msk [vmem:[#allocation2 + $0x4] sm:$0xf] %vm564, %v561
    // Predicated region
    $region42: #{conv_node_forward.1} parent=1 // pred_check
      _
    $region43: #{conv_node_forward.1} parent=1 // pred_check_branch
      %568 = sbr.rel (0) target = $region45
    $region44: #{conv_node_forward.1} parent=1 // pred_region
      %s570 = ssub.s32 128, 128
      %571 = vsyncadd [#allocation3], %s570
      %s572 = sshll.u32 [#allocation2], 4
      %s573 = int_to_ptr.vmem [resolvable:$true] %s572
      %578 = dma.vmem_to_hbm [thread:$0]  %s573, 128, %s10, [#allocation3], 64, 64, 4
    $region45: #{conv_node_forward.1} parent=1 // pred_fallthru
      _
    // Predicated region
    $region46: #{conv_node_forward.1} parent=1 // pred_check
      _
    $region47: #{conv_node_forward.1} parent=1 // pred_check_branch
      %580 = sbr.rel (0) target = $region49
    $region48: #{conv_node_forward.1} parent=1 // pred_region
      %581 = dma.done [#allocation3], 128
    $region49: #{conv_node_forward.1} parent=1 // pred_fallthru
      _
    %582 = vsyncpa [#allocation3], 1

</llo_original>
